<compile_context>
chip_gen: v7x
topology: tpu7x:2x2x1
jax: 0.10.0
libtpu: 0.0.40
codegen_flags: <defaults>
</compile_context>

<pallas_src>
import jax
import jax.numpy as jnp
from jax.experimental import pallas as pl
from jax.experimental.pallas import tpu as pltpu

PAD = 128          # lane-aligned padded feature width for every layer
TILE_B_MAX = 2048  # batch rows per grid step; fits v5e/v6e/v7x VMEM with double-buffering
LAYER_SIZES = [(13, 25), (25, 64), (64, 32), (32, 2)]


def _round_up(n, m):
    return ((n + m - 1) // m) * m


def mlp_kernel(x_ref, w1_ref, w2_ref, w3_ref, w4_ref, o_ref):
    """relu(fc1) -> relu(fc2) -> relu(fc3) -> fc4; biases are folded into the weights."""
    h = jnp.dot(x_ref[...], w1_ref[...], preferred_element_type=jnp.float32)
    h = jnp.maximum(h, 0.0).astype(jnp.bfloat16)
    h = jnp.dot(h, w2_ref[...], preferred_element_type=jnp.float32)
    h = jnp.maximum(h, 0.0).astype(jnp.bfloat16)
    h = jnp.dot(h, w3_ref[...], preferred_element_type=jnp.float32)
    h = jnp.maximum(h, 0.0).astype(jnp.bfloat16)
    o_ref[...] = jnp.dot(h, w4_ref[...], preferred_element_type=jnp.float32)


def pack_params(params):
    """Fold (w, b) into 128x128 bf16 weights; lane PAD-1 is the propagated bias channel."""
    packed = []
    n_layers = len(LAYER_SIZES)
    for idx, (fan_in, fan_out) in enumerate(LAYER_SIZES):
        w = params[f"w{idx + 1}"]
        b = params[f"b{idx + 1}"].reshape(-1)
        wp = jnp.zeros((PAD, PAD), jnp.float32)
        wp = wp.at[:fan_in, :fan_out].set(w)
        wp = wp.at[PAD - 1, :fan_out].set(b)          # ones-channel * b == + bias
        if idx + 1 < n_layers:
            wp = wp.at[PAD - 1, PAD - 1].set(1.0)     # keep the bias channel alive
        packed.append(wp.astype(jnp.bfloat16))
    return tuple(packed)


def fc_classifier_forward(x, params):
    """x: [B, 13] float32. Returns [B, 2] float32 logits."""
    B, F = x.shape
    n_out = LAYER_SIZES[-1][1]

    tile_b = min(TILE_B_MAX, _round_up(B, 8))
    b_pad = _round_up(B, tile_b)

    # Lane-dense, bias-channel-augmented input (bf16 halves the HBM x stream).
    xp = jnp.zeros((b_pad, PAD), jnp.float32)
    xp = xp.at[:B, :F].set(x)
    xp = xp.at[:, PAD - 1].set(1.0)
    xp = xp.astype(jnp.bfloat16)

    w1p, w2p, w3p, w4p = pack_params(params)

    grid = (pl.cdiv(b_pad, tile_b),)
    act_spec = pl.BlockSpec((tile_b, PAD), lambda i: (i, 0))
    wgt_spec = pl.BlockSpec((PAD, PAD), lambda i: (0, 0))   # VMEM-resident across all tiles

    out = pl.pallas_call(
        mlp_kernel,
        out_shape=jax.ShapeDtypeStruct((b_pad, PAD), jnp.float32),
        grid=grid,
        in_specs=[act_spec, wgt_spec, wgt_spec, wgt_spec, wgt_spec],
        out_specs=act_spec,
        compiler_params=pltpu.CompilerParams(
            dimension_semantics=("parallel",)),
    )(xp, w1p, w2p, w3p, w4p)

    return out[:B, :n_out]


def init_params(key):
    """Deterministic init mimicking nn.Linear's uniform(-1/sqrt(fan_in), 1/sqrt(fan_in))."""
    params = {}
    keys = jax.random.split(key, len(LAYER_SIZES) * 2)
    for i, (fan_in, fan_out) in enumerate(LAYER_SIZES):
        bound = 1.0 / jnp.sqrt(jnp.float32(fan_in))
        w = jax.random.uniform(keys[2 * i], (fan_in, fan_out),
                               minval=-bound, maxval=bound, dtype=jnp.float32)
        b = jax.random.uniform(keys[2 * i + 1], (1, fan_out),
                               minval=-bound, maxval=bound, dtype=jnp.float32)
        params[f"w{i + 1}"] = w
        params[f"b{i + 1}"] = b
    return params


def reference_forward_f32(x, p):
    """Original module semantics in pure f32."""
    h = jnp.maximum(x @ p["w1"] + p["b1"], 0.0)
    h = jnp.maximum(h @ p["w2"] + p["b2"], 0.0)
    h = jnp.maximum(h @ p["w3"] + p["b3"], 0.0)
    return h @ p["w4"] + p["b4"]


def reference_forward_matched(x, params):
    """Same padded / bf16 / f32-accumulate math as the kernel, in plain XLA."""
    B, F = x.shape
    xp = jnp.zeros((B, PAD), jnp.float32).at[:, :F].set(x).at[:, PAD - 1].set(1.0)
    h = xp.astype(jnp.bfloat16)
    wps = pack_params(params)
    for idx, w in enumerate(wps):
        h = jnp.dot(h, w, preferred_element_type=jnp.float32)
        if idx + 1 < len(wps):
            h = jnp.maximum(h, 0.0).astype(jnp.bfloat16)
    return h[:, :LAYER_SIZES[-1][1]]


if __name__ == "__main__":
    key = jax.random.PRNGKey(0)
    k_params, k_x = jax.random.split(key)

    params = init_params(k_params)
    x = jax.random.normal(k_x, (8, 13), dtype=jnp.float32)   # batch=8, features=13

    out = fc_classifier_forward(x, params)
    out = jax.block_until_ready(out)
    assert out.shape == (8, 2), out.shape

    # Tight check vs an XLA implementation of the identical padded/bf16 math.
    ref_matched = reference_forward_matched(x, params)
    assert jnp.allclose(out, ref_matched, atol=2e-3, rtol=2e-3), \
        "mismatch vs matched bf16 reference"

    # Loose check vs the original f32 module semantics (bf16 MXU inputs, f32 accumulation).
    ref_f32 = reference_forward_f32(x, params)
    assert jnp.allclose(out, ref_f32, atol=5e-2, rtol=5e-2), "mismatch vs f32 reference"

    print("KERNEL_OK")
</pallas_src>

<mosaic_0001>
module attributes {stable_mosaic.version = 11 : i64} {
  func.func @mlp_kernel(%arg0: i32, %arg1: memref<8x128xbf16, #tpu.memory_space<vmem>>, %arg2: memref<128x128xbf16, #tpu.memory_space<vmem>>, %arg3: memref<128x128xbf16, #tpu.memory_space<vmem>>, %arg4: memref<128x128xbf16, #tpu.memory_space<vmem>>, %arg5: memref<128x128xbf16, #tpu.memory_space<vmem>>, %arg6: memref<8x128xf32, #tpu.memory_space<vmem>>) attributes {dimension_semantics = [#tpu.dimension_semantics<parallel>], iteration_bounds = array<i64: 1>, scalar_prefetch = 0 : i64, scratch_operands = 0 : i64, tpu.core_type = #tpu.core_type<tc>, window_params = [{transform_indices = @transform_0, window_bounds = array<i64: 8, 128>}, {pipeline_mode = #tpu.pipeline_mode<synchronous>, transform_indices = @transform_1, window_bounds = array<i64: 128, 128>}, {pipeline_mode = #tpu.pipeline_mode<synchronous>, transform_indices = @transform_2, window_bounds = array<i64: 128, 128>}, {pipeline_mode = #tpu.pipeline_mode<synchronous>, transform_indices = @transform_3, window_bounds = array<i64: 128, 128>}, {pipeline_mode = #tpu.pipeline_mode<synchronous>, transform_indices = @transform_4, window_bounds = array<i64: 128, 128>}, {transform_indices = @transform_5, window_bounds = array<i64: 8, 128>}]} {
    %c0 = arith.constant 0 : index
    %c0_0 = arith.constant 0 : index
    %0 = vector.load %arg1[%c0, %c0_0] : memref<8x128xbf16, #tpu.memory_space<vmem>>, vector<8x128xbf16>
    %c0_1 = arith.constant 0 : index
    %c0_2 = arith.constant 0 : index
    %1 = vector.load %arg2[%c0_1, %c0_2] : memref<128x128xbf16, #tpu.memory_space<vmem>>, vector<128x128xbf16>
    %cst = arith.constant dense<0.000000e+00> : vector<8x128xf32>
    %2 = tpu.matmul %0, %1, %cst {dimension_numbers = #tpu.dot_dimension_numbers<[1], [0], [0], [1], [0, 0, 1, 1], [], []>} : vector<8x128xbf16>, vector<128x128xbf16>, vector<8x128xf32> -> vector<8x128xf32>
    %cst_3 = arith.constant 0.000000e+00 : f32
    %3 = vector.broadcast %cst_3 : f32 to vector<8x128xf32>
    %4 = arith.maximumf %2, %3 : vector<8x128xf32>
    %5 = arith.truncf %4 : vector<8x128xf32> to vector<8x128xbf16>
    %c0_4 = arith.constant 0 : index
    %c0_5 = arith.constant 0 : index
    %6 = vector.load %arg3[%c0_4, %c0_5] : memref<128x128xbf16, #tpu.memory_space<vmem>>, vector<128x128xbf16>
    %cst_6 = arith.constant dense<0.000000e+00> : vector<8x128xf32>
    %7 = tpu.matmul %5, %6, %cst_6 {dimension_numbers = #tpu.dot_dimension_numbers<[1], [0], [0], [1], [0, 0, 1, 1], [], []>} : vector<8x128xbf16>, vector<128x128xbf16>, vector<8x128xf32> -> vector<8x128xf32>
    %cst_7 = arith.constant 0.000000e+00 : f32
    %8 = vector.broadcast %cst_7 : f32 to vector<8x128xf32>
    %9 = arith.maximumf %7, %8 : vector<8x128xf32>
    %10 = arith.truncf %9 : vector<8x128xf32> to vector<8x128xbf16>
    %c0_8 = arith.constant 0 : index
    %c0_9 = arith.constant 0 : index
    %11 = vector.load %arg4[%c0_8, %c0_9] : memref<128x128xbf16, #tpu.memory_space<vmem>>, vector<128x128xbf16>
    %cst_10 = arith.constant dense<0.000000e+00> : vector<8x128xf32>
    %12 = tpu.matmul %10, %11, %cst_10 {dimension_numbers = #tpu.dot_dimension_numbers<[1], [0], [0], [1], [0, 0, 1, 1], [], []>} : vector<8x128xbf16>, vector<128x128xbf16>, vector<8x128xf32> -> vector<8x128xf32>
    %cst_11 = arith.constant 0.000000e+00 : f32
    %13 = vector.broadcast %cst_11 : f32 to vector<8x128xf32>
    %14 = arith.maximumf %12, %13 : vector<8x128xf32>
    %15 = arith.truncf %14 : vector<8x128xf32> to vector<8x128xbf16>
    %c0_12 = arith.constant 0 : index
    %c0_13 = arith.constant 0 : index
    %16 = vector.load %arg5[%c0_12, %c0_13] : memref<128x128xbf16, #tpu.memory_space<vmem>>, vector<128x128xbf16>
    %cst_14 = arith.constant dense<0.000000e+00> : vector<8x128xf32>
    %17 = tpu.matmul %15, %16, %cst_14 {dimension_numbers = #tpu.dot_dimension_numbers<[1], [0], [0], [1], [0, 0, 1, 1], [], []>} : vector<8x128xbf16>, vector<128x128xbf16>, vector<8x128xf32> -> vector<8x128xf32>
    %c0_15 = arith.constant 0 : index
    %c0_16 = arith.constant 0 : index
    %18 = vector.load %arg6[%c0_15, %c0_16] : memref<8x128xf32, #tpu.memory_space<vmem>>, vector<8x128xf32>
    tpu.vector_store %arg6[%c0_15, %c0_16], %17 {strides = array<i32>} : memref<8x128xf32, #tpu.memory_space<vmem>>, vector<8x128xf32>,
    return
  }
  func.func @transform_0(%arg0: i32) -> (i32, i32) {
    %c0_i32 = arith.constant 0 : i32
    %c0_i32_0 = arith.constant 0 : i32
    return %arg0, %c0_i32 : i32, i32
  }
  func.func @transform_1(%arg0: i32) -> (i32, i32) {
    %c0_i32 = arith.constant 0 : i32
    %c0_i32_0 = arith.constant 0 : i32
    %c0_i32_1 = arith.constant 0 : i32
    return %c0_i32, %c0_i32_0 : i32, i32
  }
  func.func @transform_2(%arg0: i32) -> (i32, i32) {
    %c0_i32 = arith.constant 0 : i32
    %c0_i32_0 = arith.constant 0 : i32
    %c0_i32_1 = arith.constant 0 : i32
    return %c0_i32, %c0_i32_0 : i32, i32
  }
  func.func @transform_3(%arg0: i32) -> (i32, i32) {
    %c0_i32 = arith.constant 0 : i32
    %c0_i32_0 = arith.constant 0 : i32
    %c0_i32_1 = arith.constant 0 : i32
    return %c0_i32, %c0_i32_0 : i32, i32
  }
  func.func @transform_4(%arg0: i32) -> (i32, i32) {
    %c0_i32 = arith.constant 0 : i32
    %c0_i32_0 = arith.constant 0 : i32
    %c0_i32_1 = arith.constant 0 : i32
    return %c0_i32, %c0_i32_0 : i32, i32
  }
  func.func @transform_5(%arg0: i32) -> (i32, i32) {
    %c0_i32 = arith.constant 0 : i32
    %c0_i32_0 = arith.constant 0 : i32
    return %arg0, %c0_i32 : i32, i32
  }
}

</mosaic_0001>

<llo_original>
// kernel: tpu_custom_call.1
$region0: #{tpu_custom_call.1}
  #allocation0 [shape = 'u32[]', space=smem, size = 0x4, offset = 0x4, fixed_abs, tag = 'smem constant byte address 0x4 - core index']
  #allocation1 [shape = 'u32[144,128]{1,0:T(1,128)}', space=vmem, size = 0x12000, scoped, tag = 'internal scratch']
  %s0 = inlined_call_operand.hbm [shape: bf16[8,128], index: 0, kind: input, shape index: {}]
  %s1 = inlined_call_operand.hbm [shape: bf16[128,128], index: 1, kind: input, shape index: {}]
  %s2 = inlined_call_operand.hbm [shape: bf16[128,128], index: 2, kind: input, shape index: {}]
  %s3 = inlined_call_operand.hbm [shape: bf16[128,128], index: 3, kind: input, shape index: {}]
  %s4 = inlined_call_operand.hbm [shape: bf16[128,128], index: 4, kind: input, shape index: {}]
  %s5 = inlined_call_operand.hbm [shape: f32[8,128], index: 5, kind: output, shape index: {}]
  %s6 = sld [smem:[#allocation0]]
  $region50: #{tpu_custom_call.1} parent=0
    _
  %s8 = ssub.s32 1, %s6
  %s9 = scalar_select 0, %s8, %s6
  $region1: #{tpu_custom_call.1} parent=0
    #allocation2 [shape = 'u8[2048]{0}', space=vmem, size = 0x800, scoped, tag = 'input window, operand 0, single buffered']
    #allocation3 [shape = 's32[1]{0}', space=sflag, size = 0x4, scoped, tag = 'scoped memory for tpu_custom_call.1']
    #allocation4 [shape = 's32[1]{0}', space=sflag, size = 0x4, scoped, tag = 'scoped memory for tpu_custom_call.1']
    #allocation5 [shape = 'u8[32768]{0}', space=vmem, size = 0x8000, scoped, tag = 'input window, operand 1, single buffered']
    #allocation6 [shape = 's32[1]{0}', space=sflag, size = 0x4, scoped, tag = 'scoped memory for tpu_custom_call.1']
    #allocation7 [shape = 'u8[32768]{0}', space=vmem, size = 0x8000, scoped, tag = 'input window, operand 2, single buffered']
    #allocation8 [shape = 'u8[32768]{0}', space=vmem, size = 0x8000, scoped, tag = 'input window, operand 3, single buffered']
    #allocation9 [shape = 's32[1]{0}', space=sflag, size = 0x4, scoped, tag = 'scoped memory for tpu_custom_call.1']
    #allocation10 [shape = 'u8[32768]{0}', space=vmem, size = 0x8000, scoped, tag = 'input window, operand 4, single buffered']
    #allocation11 [shape = 'u8[4096]{0}', space=vmem, size = 0x1000, scoped, tag = 'output window, operand 0, single buffered']
    %10 = vsyncpa [#allocation3], 0
    %11 = vsyncpa [#allocation6], 0
    %12 = vsyncpa [#allocation9], 0
    %13 = vsyncpa [#allocation4], 0
    // Predicated region
    $region2: #{tpu_custom_call.1} parent=1 // pred_check
      _
    $region3: #{tpu_custom_call.1} parent=1 // pred_check_branch
      %15 = sbr.rel (0) target = $region5
    $region4: #{tpu_custom_call.1} parent=1 // pred_region
      %s17 = ssub.s32 64, 64
      %18 = vsyncadd [#allocation3], %s17
      %s20 = sshll.u32 [#allocation2], 4
      %s21 = int_to_ptr.vmem [resolvable:$true] %s20
      %23 = dma.hbm_to_vmem [thread:$0]  %s0, 64, %s21, [#allocation3]
    $region5: #{tpu_custom_call.1} parent=1 // pred_fallthru
      _
    // Predicated region
    $region6: #{tpu_custom_call.1} parent=1 // pred_check
      _
    $region7: #{tpu_custom_call.1} parent=1 // pred_check_branch
      %25 = sbr.rel (0) target = $region9
    $region8: #{tpu_custom_call.1} parent=1 // pred_region
      %s27 = ssub.s32 1024, 1024
      %28 = vsyncadd [#allocation6], %s27
      %s29 = sshll.u32 [#allocation5], 4
      %s30 = int_to_ptr.vmem [resolvable:$true] %s29
      %35 = dma.hbm_to_vmem [thread:$0]  %s1, 1024, %s30, [#allocation6], 64, 64, 4
    $region9: #{tpu_custom_call.1} parent=1 // pred_fallthru
      _
    // Predicated region
    $region10: #{tpu_custom_call.1} parent=1 // pred_check
      _
    $region11: #{tpu_custom_call.1} parent=1 // pred_check_branch
      %37 = sbr.rel (0) target = $region13
    $region12: #{tpu_custom_call.1} parent=1 // pred_region
      %s39 = ssub.s32 1024, 1024
      %40 = vsyncadd [#allocation6], %s39
      %s41 = sshll.u32 [#allocation7], 4
      %s42 = int_to_ptr.vmem [resolvable:$true] %s41
      %47 = dma.hbm_to_vmem [thread:$0]  %s2, 1024, %s42, [#allocation6], 64, 64, 4
    $region13: #{tpu_custom_call.1} parent=1 // pred_fallthru
      _
    // Predicated region
    $region14: #{tpu_custom_call.1} parent=1 // pred_check
      _
    $region15: #{tpu_custom_call.1} parent=1 // pred_check_branch
      %49 = sbr.rel (0) target = $region17
    $region16: #{tpu_custom_call.1} parent=1 // pred_region
      %s51 = ssub.s32 1024, 1024
      %52 = vsyncadd [#allocation9], %s51
      %s53 = sshll.u32 [#allocation8], 4
      %s54 = int_to_ptr.vmem [resolvable:$true] %s53
      %59 = dma.hbm_to_vmem [thread:$0]  %s3, 1024, %s54, [#allocation9], 64, 64, 4
    $region17: #{tpu_custom_call.1} parent=1 // pred_fallthru
      _
    // Predicated region
    $region18: #{tpu_custom_call.1} parent=1 // pred_check
      _
    $region19: #{tpu_custom_call.1} parent=1 // pred_check_branch
      %61 = sbr.rel (0) target = $region21
    $region20: #{tpu_custom_call.1} parent=1 // pred_region
      %s63 = ssub.s32 1024, 1024
      %64 = vsyncadd [#allocation9], %s63
      %s65 = sshll.u32 [#allocation10], 4
      %s66 = int_to_ptr.vmem [resolvable:$true] %s65
      %71 = dma.hbm_to_vmem [thread:$0]  %s4, 1024, %s66, [#allocation9], 64, 64, 4
    $region21: #{tpu_custom_call.1} parent=1 // pred_fallthru
      _
    // Predicated region
    $region22: #{tpu_custom_call.1} parent=1 // pred_check
      _
    $region23: #{tpu_custom_call.1} parent=1 // pred_check_branch
      %73 = sbr.rel (0) target = $region25
    $region24: #{tpu_custom_call.1} parent=1 // pred_region
      %74 = dma.done [#allocation3], 64
    $region25: #{tpu_custom_call.1} parent=1 // pred_fallthru
      _
    // Predicated region
    $region26: #{tpu_custom_call.1} parent=1 // pred_check
      _
    $region27: #{tpu_custom_call.1} parent=1 // pred_check_branch
      %76 = sbr.rel (0) target = $region29
    $region28: #{tpu_custom_call.1} parent=1 // pred_region
      %77 = dma.done [#allocation6], 1024
    $region29: #{tpu_custom_call.1} parent=1 // pred_fallthru
      _
    // Predicated region
    $region30: #{tpu_custom_call.1} parent=1 // pred_check
      _
    $region31: #{tpu_custom_call.1} parent=1 // pred_check_branch
      %79 = sbr.rel (0) target = $region33
    $region32: #{tpu_custom_call.1} parent=1 // pred_region
      %80 = dma.done [#allocation6], 1024
    $region33: #{tpu_custom_call.1} parent=1 // pred_fallthru
      _
    // Predicated region
    $region34: #{tpu_custom_call.1} parent=1 // pred_check
      _
    $region35: #{tpu_custom_call.1} parent=1 // pred_check_branch
      %82 = sbr.rel (0) target = $region37
    $region36: #{tpu_custom_call.1} parent=1 // pred_region
      %83 = dma.done [#allocation9], 1024
    $region37: #{tpu_custom_call.1} parent=1 // pred_fallthru
      _
    // Predicated region
    $region38: #{tpu_custom_call.1} parent=1 // pred_check
      _
    $region39: #{tpu_custom_call.1} parent=1 // pred_check_branch
      %85 = sbr.rel (0) target = $region41
    $region40: #{tpu_custom_call.1} parent=1 // pred_region
      %86 = dma.done [#allocation9], 1024
    $region41: #{tpu_custom_call.1} parent=1 // pred_fallthru
      _
    %v88 = vld [vmem:[#allocation2] sm:$0xf]
    %v89 = vld [vmem:[#allocation5] sm:$0xf]
    %v90 = vld [vmem:[#allocation5 + $0x4] sm:$0xf]
    %v91 = vld [vmem:[#allocation5 + $0x8] sm:$0xf]
    %v92 = vld [vmem:[#allocation5 + $0xc] sm:$0xf]
    %v93 = vld [vmem:[#allocation5 + $0x10] sm:$0xf]
    %v94 = vld [vmem:[#allocation5 + $0x14] sm:$0xf]
    %v95 = vld [vmem:[#allocation5 + $0x18] sm:$0xf]
    %v96 = vld [vmem:[#allocation5 + $0x1c] sm:$0xf]
    %v97 = vld [vmem:[#allocation5 + $0x20] sm:$0xf]
    %v98 = vld [vmem:[#allocation5 + $0x24] sm:$0xf]
    %v99 = vld [vmem:[#allocation5 + $0x28] sm:$0xf]
    %v100 = vld [vmem:[#allocation5 + $0x2c] sm:$0xf]
    %v101 = vld [vmem:[#allocation5 + $0x30] sm:$0xf]
    %v102 = vld [vmem:[#allocation5 + $0x34] sm:$0xf]
    %v103 = vld [vmem:[#allocation5 + $0x38] sm:$0xf]
    %v104 = vld [vmem:[#allocation5 + $0x3c] sm:$0xf]
    %v121 = vunpack.c.l.b16 %v89
    %v122 = vunpack.c.l.b16 %v90
    %v123 = vunpack.c.l.b16 %v91
    %v124 = vunpack.c.l.b16 %v92
    %v125 = vunpack.c.l.b16 %v93
    %v126 = vunpack.c.l.b16 %v94
    %v127 = vunpack.c.l.b16 %v95
    %v128 = vunpack.c.l.b16 %v96
    %v129 = vunpack.c.l.b16 %v97
    %v130 = vunpack.c.l.b16 %v98
    %v131 = vunpack.c.l.b16 %v99
    %v132 = vunpack.c.l.b16 %v100
    %v133 = vunpack.c.l.b16 %v101
    %v134 = vunpack.c.l.b16 %v102
    %v135 = vunpack.c.l.b16 %v103
    %v136 = vunpack.c.l.b16 %v104
    %v137 = vpack.c.b16 %v122, %v121
    %v138 = vpack.c.b16 %v124, %v123
    %v139 = vpack.c.b16 %v126, %v125
    %v140 = vpack.c.b16 %v128, %v127
    %v141 = vpack.c.b16 %v130, %v129
    %v142 = vpack.c.b16 %v132, %v131
    %v143 = vpack.c.b16 %v134, %v133
    %v144 = vpack.c.b16 %v136, %v135
    %153 = vmatprep.subr.bf16.mxu0 0
    %154 = vmatpush1.bf16.msra.mxu0 %v137
    %155 = vmatprep.subr.bf16.mxu0 0
    %156 = vmatpush1.bf16.msra.mxu0 %v138
    %157 = vmatprep.subr.bf16.mxu0 0
    %158 = vmatpush1.bf16.msra.mxu0 %v139
    %159 = vmatprep.subr.bf16.mxu0 0
    %160 = vmatpush1.bf16.msra.mxu0 %v140
    %161 = vmatprep.subr.bf16.mxu0 0
    %162 = vmatpush1.bf16.msra.mxu0 %v141
    %163 = vmatprep.subr.bf16.mxu0 0
    %164 = vmatpush1.bf16.msra.mxu0 %v142
    %165 = vmatprep.subr.bf16.mxu0 0
    %166 = vmatpush1.bf16.msra.mxu0 %v143
    %167 = vmatprep.subr.bf16.mxu0 0
    %168 = vmatpush1.bf16.msra.mxu0 %v144
    %169 = vmatprep.subr.bf16.mxu0 0
    %170 = vmatpush1.bf16.msra.mxu0 0
    %171 = vmatprep.subr.bf16.mxu0 0
    %172 = vmatpush1.bf16.msra.mxu0 0
    %173 = vmatprep.subr.bf16.mxu0 0
    %174 = vmatpush1.bf16.msra.mxu0 0
    %175 = vmatprep.subr.bf16.mxu0 0
    %176 = vmatpush1.bf16.msra.mxu0 0
    %177 = vmatprep.subr.bf16.mxu0 0
    %178 = vmatpush1.bf16.msra.mxu0 0
    %179 = vmatprep.subr.bf16.mxu0 0
    %180 = vmatpush1.bf16.msra.mxu0 0
    %181 = vmatprep.subr.bf16.mxu0 0
    %182 = vmatpush1.bf16.msra.mxu0 0
    %183 = vmatprep.subr.bf16.mxu0 0
    %184 = vmatpush1.bf16.msra.mxu0 0
    %185 = vmatprep.mubr.bf16.mxu0 0
    %186 = vmatmul.mubr.bf16.gmra.mrb[0].mxu0 %v88
    %v187 = vpop.f32.mrb[0].mxu0
    %v188 = vadd.f32 0.0, %v187
    %v189 = vpop.f32.mrb[0].mxu0
    %v190 = vpop.f32.mrb[0].mxu0
    %v191 = vpop.f32.mrb[0].mxu0
    %192 = vdwg.mxu0
    %v193 = vmax.f32 %v188, 0.0
    %v194 = vpack.c.bf16 %v193, %v193
    %v195 = vld [vmem:[#allocation7] sm:$0xf]
    %v196 = vld [vmem:[#allocation7 + $0x4] sm:$0xf]
    %v197 = vld [vmem:[#allocation7 + $0x8] sm:$0xf]
    %v198 = vld [vmem:[#allocation7 + $0xc] sm:$0xf]
    %v199 = vld [vmem:[#allocation7 + $0x10] sm:$0xf]
    %v200 = vld [vmem:[#allocation7 + $0x14] sm:$0xf]
    %v201 = vld [vmem:[#allocation7 + $0x18] sm:$0xf]
    %v202 = vld [vmem:[#allocation7 + $0x1c] sm:$0xf]
    %v203 = vld [vmem:[#allocation7 + $0x20] sm:$0xf]
    %v204 = vld [vmem:[#allocation7 + $0x24] sm:$0xf]
    %v205 = vld [vmem:[#allocation7 + $0x28] sm:$0xf]
    %v206 = vld [vmem:[#allocation7 + $0x2c] sm:$0xf]
    %v207 = vld [vmem:[#allocation7 + $0x30] sm:$0xf]
    %v208 = vld [vmem:[#allocation7 + $0x34] sm:$0xf]
    %v209 = vld [vmem:[#allocation7 + $0x38] sm:$0xf]
    %v210 = vld [vmem:[#allocation7 + $0x3c] sm:$0xf]
    %v227 = vunpack.c.l.b16 %v195
    %v228 = vunpack.c.l.b16 %v196
    %v229 = vunpack.c.l.b16 %v197
    %v230 = vunpack.c.l.b16 %v198
    %v231 = vunpack.c.l.b16 %v199
    %v232 = vunpack.c.l.b16 %v200
    %v233 = vunpack.c.l.b16 %v201
    %v234 = vunpack.c.l.b16 %v202
    %v235 = vunpack.c.l.b16 %v203
    %v236 = vunpack.c.l.b16 %v204
    %v237 = vunpack.c.l.b16 %v205
    %v238 = vunpack.c.l.b16 %v206
    %v239 = vunpack.c.l.b16 %v207
    %v240 = vunpack.c.l.b16 %v208
    %v241 = vunpack.c.l.b16 %v209
    %v242 = vunpack.c.l.b16 %v210
    %v243 = vpack.c.b16 %v228, %v227
    %v244 = vpack.c.b16 %v230, %v229
    %v245 = vpack.c.b16 %v232, %v231
    %v246 = vpack.c.b16 %v234, %v233
    %v247 = vpack.c.b16 %v236, %v235
    %v248 = vpack.c.b16 %v238, %v237
    %v249 = vpack.c.b16 %v240, %v239
    %v250 = vpack.c.b16 %v242, %v241
    %259 = vmatprep.subr.bf16.mxu0 0
    %260 = vmatpush1.bf16.msra.mxu0 %v243
    %261 = vmatprep.subr.bf16.mxu0 0
    %262 = vmatpush1.bf16.msra.mxu0 %v244
    %263 = vmatprep.subr.bf16.mxu0 0
    %264 = vmatpush1.bf16.msra.mxu0 %v245
    %265 = vmatprep.subr.bf16.mxu0 0
    %266 = vmatpush1.bf16.msra.mxu0 %v246
    %267 = vmatprep.subr.bf16.mxu0 0
    %268 = vmatpush1.bf16.msra.mxu0 %v247
    %269 = vmatprep.subr.bf16.mxu0 0
    %270 = vmatpush1.bf16.msra.mxu0 %v248
    %271 = vmatprep.subr.bf16.mxu0 0
    %272 = vmatpush1.bf16.msra.mxu0 %v249
    %273 = vmatprep.subr.bf16.mxu0 0
    %274 = vmatpush1.bf16.msra.mxu0 %v250
    %275 = vmatprep.subr.bf16.mxu0 0
    %276 = vmatpush1.bf16.msra.mxu0 0
    %277 = vmatprep.subr.bf16.mxu0 0
    %278 = vmatpush1.bf16.msra.mxu0 0
    %279 = vmatprep.subr.bf16.mxu0 0
    %280 = vmatpush1.bf16.msra.mxu0 0
    %281 = vmatprep.subr.bf16.mxu0 0
    %282 = vmatpush1.bf16.msra.mxu0 0
    %283 = vmatprep.subr.bf16.mxu0 0
    %284 = vmatpush1.bf16.msra.mxu0 0
    %285 = vmatprep.subr.bf16.mxu0 0
    %286 = vmatpush1.bf16.msra.mxu0 0
    %287 = vmatprep.subr.bf16.mxu0 0
    %288 = vmatpush1.bf16.msra.mxu0 0
    %289 = vmatprep.subr.bf16.mxu0 0
    %290 = vmatpush1.bf16.msra.mxu0 0
    %291 = vmatprep.mubr.bf16.mxu0 0
    %292 = vmatmul.mubr.bf16.gmra.mrb[0].mxu0 %v194
    %v293 = vpop.f32.mrb[0].mxu0
    %v294 = vadd.f32 0.0, %v293
    %v295 = vpop.f32.mrb[0].mxu0
    %v296 = vpop.f32.mrb[0].mxu0
    %v297 = vpop.f32.mrb[0].mxu0
    %298 = vdwg.mxu0
    %v299 = vmax.f32 %v294, 0.0
    %v300 = vpack.c.bf16 %v299, %v299
    %v301 = vld [vmem:[#allocation8] sm:$0xf]
    %v302 = vld [vmem:[#allocation8 + $0x4] sm:$0xf]
    %v303 = vld [vmem:[#allocation8 + $0x8] sm:$0xf]
    %v304 = vld [vmem:[#allocation8 + $0xc] sm:$0xf]
    %v305 = vld [vmem:[#allocation8 + $0x10] sm:$0xf]
    %v306 = vld [vmem:[#allocation8 + $0x14] sm:$0xf]
    %v307 = vld [vmem:[#allocation8 + $0x18] sm:$0xf]
    %v308 = vld [vmem:[#allocation8 + $0x1c] sm:$0xf]
    %v309 = vld [vmem:[#allocation8 + $0x20] sm:$0xf]
    %v310 = vld [vmem:[#allocation8 + $0x24] sm:$0xf]
    %v311 = vld [vmem:[#allocation8 + $0x28] sm:$0xf]
    %v312 = vld [vmem:[#allocation8 + $0x2c] sm:$0xf]
    %v313 = vld [vmem:[#allocation8 + $0x30] sm:$0xf]
    %v314 = vld [vmem:[#allocation8 + $0x34] sm:$0xf]
    %v315 = vld [vmem:[#allocation8 + $0x38] sm:$0xf]
    %v316 = vld [vmem:[#allocation8 + $0x3c] sm:$0xf]
    %v333 = vunpack.c.l.b16 %v301
    %v334 = vunpack.c.l.b16 %v302
    %v335 = vunpack.c.l.b16 %v303
    %v336 = vunpack.c.l.b16 %v304
    %v337 = vunpack.c.l.b16 %v305
    %v338 = vunpack.c.l.b16 %v306
    %v339 = vunpack.c.l.b16 %v307
    %v340 = vunpack.c.l.b16 %v308
    %v341 = vunpack.c.l.b16 %v309
    %v342 = vunpack.c.l.b16 %v310
    %v343 = vunpack.c.l.b16 %v311
    %v344 = vunpack.c.l.b16 %v312
    %v345 = vunpack.c.l.b16 %v313
    %v346 = vunpack.c.l.b16 %v314
    %v347 = vunpack.c.l.b16 %v315
    %v348 = vunpack.c.l.b16 %v316
    %v349 = vpack.c.b16 %v334, %v333
    %v350 = vpack.c.b16 %v336, %v335
    %v351 = vpack.c.b16 %v338, %v337
    %v352 = vpack.c.b16 %v340, %v339
    %v353 = vpack.c.b16 %v342, %v341
    %v354 = vpack.c.b16 %v344, %v343
    %v355 = vpack.c.b16 %v346, %v345
    %v356 = vpack.c.b16 %v348, %v347
    %365 = vmatprep.subr.bf16.mxu0 0
    %366 = vmatpush1.bf16.msra.mxu0 %v349
    %367 = vmatprep.subr.bf16.mxu0 0
    %368 = vmatpush1.bf16.msra.mxu0 %v350
    %369 = vmatprep.subr.bf16.mxu0 0
    %370 = vmatpush1.bf16.msra.mxu0 %v351
    %371 = vmatprep.subr.bf16.mxu0 0
    %372 = vmatpush1.bf16.msra.mxu0 %v352
    %373 = vmatprep.subr.bf16.mxu0 0
    %374 = vmatpush1.bf16.msra.mxu0 %v353
    %375 = vmatprep.subr.bf16.mxu0 0
    %376 = vmatpush1.bf16.msra.mxu0 %v354
    %377 = vmatprep.subr.bf16.mxu0 0
    %378 = vmatpush1.bf16.msra.mxu0 %v355
    %379 = vmatprep.subr.bf16.mxu0 0
    %380 = vmatpush1.bf16.msra.mxu0 %v356
    %381 = vmatprep.subr.bf16.mxu0 0
    %382 = vmatpush1.bf16.msra.mxu0 0
    %383 = vmatprep.subr.bf16.mxu0 0
    %384 = vmatpush1.bf16.msra.mxu0 0
    %385 = vmatprep.subr.bf16.mxu0 0
    %386 = vmatpush1.bf16.msra.mxu0 0
    %387 = vmatprep.subr.bf16.mxu0 0
    %388 = vmatpush1.bf16.msra.mxu0 0
    %389 = vmatprep.subr.bf16.mxu0 0
    %390 = vmatpush1.bf16.msra.mxu0 0
    %391 = vmatprep.subr.bf16.mxu0 0
    %392 = vmatpush1.bf16.msra.mxu0 0
    %393 = vmatprep.subr.bf16.mxu0 0
    %394 = vmatpush1.bf16.msra.mxu0 0
    %395 = vmatprep.subr.bf16.mxu0 0
    %396 = vmatpush1.bf16.msra.mxu0 0
    %397 = vmatprep.mubr.bf16.mxu0 0
    %398 = vmatmul.mubr.bf16.gmra.mrb[0].mxu0 %v300
    %v399 = vpop.f32.mrb[0].mxu0
    %v400 = vadd.f32 0.0, %v399
    %v401 = vpop.f32.mrb[0].mxu0
    %v402 = vpop.f32.mrb[0].mxu0
    %v403 = vpop.f32.mrb[0].mxu0
    %404 = vdwg.mxu0
    %v405 = vmax.f32 %v400, 0.0
    %v406 = vpack.c.bf16 %v405, %v405
    %v407 = vld [vmem:[#allocation10] sm:$0xf]
    %v408 = vld [vmem:[#allocation10 + $0x4] sm:$0xf]
    %v409 = vld [vmem:[#allocation10 + $0x8] sm:$0xf]
    %v410 = vld [vmem:[#allocation10 + $0xc] sm:$0xf]
    %v411 = vld [vmem:[#allocation10 + $0x10] sm:$0xf]
    %v412 = vld [vmem:[#allocation10 + $0x14] sm:$0xf]
    %v413 = vld [vmem:[#allocation10 + $0x18] sm:$0xf]
    %v414 = vld [vmem:[#allocation10 + $0x1c] sm:$0xf]
    %v415 = vld [vmem:[#allocation10 + $0x20] sm:$0xf]
    %v416 = vld [vmem:[#allocation10 + $0x24] sm:$0xf]
    %v417 = vld [vmem:[#allocation10 + $0x28] sm:$0xf]
    %v418 = vld [vmem:[#allocation10 + $0x2c] sm:$0xf]
    %v419 = vld [vmem:[#allocation10 + $0x30] sm:$0xf]
    %v420 = vld [vmem:[#allocation10 + $0x34] sm:$0xf]
    %v421 = vld [vmem:[#allocation10 + $0x38] sm:$0xf]
    %v422 = vld [vmem:[#allocation10 + $0x3c] sm:$0xf]
    %v439 = vunpack.c.l.b16 %v407
    %v440 = vunpack.c.l.b16 %v408
    %v441 = vunpack.c.l.b16 %v409
    %v442 = vunpack.c.l.b16 %v410
    %v443 = vunpack.c.l.b16 %v411
    %v444 = vunpack.c.l.b16 %v412
    %v445 = vunpack.c.l.b16 %v413
    %v446 = vunpack.c.l.b16 %v414
    %v447 = vunpack.c.l.b16 %v415
    %v448 = vunpack.c.l.b16 %v416
    %v449 = vunpack.c.l.b16 %v417
    %v450 = vunpack.c.l.b16 %v418
    %v451 = vunpack.c.l.b16 %v419
    %v452 = vunpack.c.l.b16 %v420
    %v453 = vunpack.c.l.b16 %v421
    %v454 = vunpack.c.l.b16 %v422
    %v455 = vpack.c.b16 %v440, %v439
    %v456 = vpack.c.b16 %v442, %v441
    %v457 = vpack.c.b16 %v444, %v443
    %v458 = vpack.c.b16 %v446, %v445
    %v459 = vpack.c.b16 %v448, %v447
    %v460 = vpack.c.b16 %v450, %v449
    %v461 = vpack.c.b16 %v452, %v451
    %v462 = vpack.c.b16 %v454, %v453
    %471 = vmatprep.subr.bf16.mxu0 0
    %472 = vmatpush1.bf16.msra.mxu0 %v455
    %473 = vmatprep.subr.bf16.mxu0 0
    %474 = vmatpush1.bf16.msra.mxu0 %v456
    %475 = vmatprep.subr.bf16.mxu0 0
    %476 = vmatpush1.bf16.msra.mxu0 %v457
    %477 = vmatprep.subr.bf16.mxu0 0
    %478 = vmatpush1.bf16.msra.mxu0 %v458
    %479 = vmatprep.subr.bf16.mxu0 0
    %480 = vmatpush1.bf16.msra.mxu0 %v459
    %481 = vmatprep.subr.bf16.mxu0 0
    %482 = vmatpush1.bf16.msra.mxu0 %v460
    %483 = vmatprep.subr.bf16.mxu0 0
    %484 = vmatpush1.bf16.msra.mxu0 %v461
    %485 = vmatprep.subr.bf16.mxu0 0
    %486 = vmatpush1.bf16.msra.mxu0 %v462
    %487 = vmatprep.subr.bf16.mxu0 0
    %488 = vmatpush1.bf16.msra.mxu0 0
    %489 = vmatprep.subr.bf16.mxu0 0
    %490 = vmatpush1.bf16.msra.mxu0 0
    %491 = vmatprep.subr.bf16.mxu0 0
    %492 = vmatpush1.bf16.msra.mxu0 0
    %493 = vmatprep.subr.bf16.mxu0 0
    %494 = vmatpush1.bf16.msra.mxu0 0
    %495 = vmatprep.subr.bf16.mxu0 0
    %496 = vmatpush1.bf16.msra.mxu0 0
    %497 = vmatprep.subr.bf16.mxu0 0
    %498 = vmatpush1.bf16.msra.mxu0 0
    %499 = vmatprep.subr.bf16.mxu0 0
    %500 = vmatpush1.bf16.msra.mxu0 0
    %501 = vmatprep.subr.bf16.mxu0 0
    %502 = vmatpush1.bf16.msra.mxu0 0
    %503 = vmatprep.mubr.bf16.mxu0 0
    %504 = vmatmul.mubr.bf16.gmra.mrb[0].mxu0 %v406
    %v505 = vpop.f32.mrb[0].mxu0
    %v506 = vadd.f32 0.0, %v505
    %v507 = vpop.f32.mrb[0].mxu0
    %v508 = vpop.f32.mrb[0].mxu0
    %v509 = vpop.f32.mrb[0].mxu0
    %510 = vdwg.mxu0
    %511 = vst [vmem:[#allocation11] sm:$0xff] %v506
    // Predicated region
    $region42: #{tpu_custom_call.1} parent=1 // pred_check
      _
    $region43: #{tpu_custom_call.1} parent=1 // pred_check_branch
      %513 = sbr.rel (0) target = $region45
    $region44: #{tpu_custom_call.1} parent=1 // pred_region
      %s515 = ssub.s32 128, 128
      %516 = vsyncadd [#allocation4], %s515
      %s518 = sshll.u32 [#allocation11], 4
      %s519 = int_to_ptr.vmem [resolvable:$true] %s518
      %521 = dma.vmem_to_hbm [thread:$0]  %s519, 128, %s5, [#allocation4]
    $region45: #{tpu_custom_call.1} parent=1 // pred_fallthru
      _
    // Predicated region
    $region46: #{tpu_custom_call.1} parent=1 // pred_check
      _
    $region47: #{tpu_custom_call.1} parent=1 // pred_check_branch
      %523 = sbr.rel (0) target = $region49
    $region48: #{tpu_custom_call.1} parent=1 // pred_region
      %524 = dma.done [#allocation4], 128
    $region49: #{tpu_custom_call.1} parent=1 // pred_fallthru
      _
    %525 = vsyncpa [#allocation3], 1
    %526 = vsyncpa [#allocation6], 1
    %527 = vsyncpa [#allocation9], 1
    %528 = vsyncpa [#allocation4], 1

</llo_original>
